<compile_context>
chip_gen: v5e
topology: v5e:2x2
jax: 0.10.0
libtpu: 0.0.40
codegen_flags: <defaults>
</compile_context>

<pallas_src>
import functools

import jax
import jax.numpy as jnp
from jax.experimental import pallas as pl
from jax.experimental.pallas import tpu as pltpu


# ---------------------------------------------------------------------------
# Kernel
# ---------------------------------------------------------------------------
def autoencoder_kernel(x_ref,
                       w1, b1, w2, b2,          # encoder layers 1-2
                       w34, b34,                # fused latent (enc L3 ∘ dec L1)
                       w5, b5, w6, b6,          # decoder layers 2-3
                       o_ref, *, mxu_dtype):
    """Whole MLP on one (batch_tile, D) activation tile.

    Weights arrive already in `mxu_dtype` (cast hoisted into the wrapper);
    bias-add / ReLU stay in f32 (safe on v5e, which has no bf16 VPU ALUs).
    """

    def dense(h, w_ref, b_ref, relu):
        y = jnp.dot(h.astype(mxu_dtype), w_ref[...],
                    preferred_element_type=jnp.float32) + b_ref[...]
        return jnp.maximum(y, 0.0) if relu else y

    h = x_ref[...]                       # already bf16 when I/O is bf16
    h = dense(h, w1, b1, True)           # D   -> 64
    h = dense(h, w2, b2, True)           # 64  -> 32
    h = dense(h, w34, b34, True)         # 32  -> 32 (through latent E, fused)
    h = dense(h, w5, b5, True)           # 32  -> 64
    h = dense(h, w6, b6, False)          # 64  -> D
    o_ref[...] = h.astype(o_ref.dtype)


# ---------------------------------------------------------------------------
# Parameters
# ---------------------------------------------------------------------------
def init_params(key, input_dim, encoding_dim=8, dtype=jnp.float32):
    """PyTorch-default-style uniform init.  Weights are (in, out)."""
    dims = [(input_dim, 64), (64, 32), (32, encoding_dim),
            (encoding_dim, 32), (32, 64), (64, input_dim)]
    params = []
    for din, dout in dims:
        key, kw, kb = jax.random.split(key, 3)
        bound = 1.0 / (din ** 0.5)
        w = jax.random.uniform(kw, (din, dout), dtype, -bound, bound)
        b = jax.random.uniform(kb, (1, dout), dtype, -bound, bound)  # 2-D for TPU
        params += [w, b]
    return params


def fold_latent(params):
    """Fuse encoder layer 3 with decoder layer 1 (pure linear∘linear: the
    reference module applies no activation on the latent, so this is exact
    up to f32 rounding)."""
    w1, b1, w2, b2, w3, b3, w4, b4, w5, b5, w6, b6 = params
    hi = jax.lax.Precision.HIGHEST
    w34 = jnp.dot(w3, w4, precision=hi)            # (32, 32)
    b34 = jnp.dot(b3, w4, precision=hi) + b4       # (1, 32)
    return [w1, b1, w2, b2, w34, b34, w5, b5, w6, b6]


# ---------------------------------------------------------------------------
# Wrapper
# ---------------------------------------------------------------------------
def _padded_vmem_bytes(shape, itemsize):
    """Bytes a 2-D array occupies in VMEM after (8,128) tiling."""
    r, c = shape
    return (pl.cdiv(r, 8) * 8) * (pl.cdiv(c, 128) * 128) * itemsize


def autoencoder_forward(x, params, *, batch_tile=None, use_bf16=True):
    """x: (N, input_dim).  Returns the reconstruction (N, input_dim).

    use_bf16=True (default): bf16 HBM I/O, bf16 weights / MXU operands with
    f32 accumulation and f32 bias/ReLU; output dtype is bf16.
    use_bf16=False keeps everything f32.
    """
    n, d = x.shape
    io_dtype = jnp.bfloat16 if use_bf16 else x.dtype
    itemsize = jnp.dtype(io_dtype).itemsize
    mxu_dtype = jnp.bfloat16 if use_bf16 else jnp.float32

    # Fuse the latent linear pair; hoist the bf16 weight cast out of the kernel
    # (weights at even indices, biases stay f32 at odd indices).
    fused = fold_latent(params)
    fused = [p.astype(jnp.bfloat16) if (use_bf16 and i % 2 == 0)
             else p.astype(jnp.float32)
             for i, p in enumerate(fused)]

    # ---- VMEM-aware batch-tile sizing (lane-padded accounting) -------------
    d_lanes = pl.cdiv(d, 128) * 128                    # lane-padded tile width
    param_vmem = sum(_padded_vmem_bytes(p.shape, p.dtype.itemsize) for p in fused)
    try:
        vmem_cap = int(pltpu.get_tpu_info().vmem_capacity_bytes)
    except Exception:
        vmem_cap = 64 << 20                            # v7x-safe fallback
    vmem_budget = min(int(vmem_cap * 0.55), 96 << 20)  # ~35 MiB v7x, ~70 MiB v5e/v6e

    per_row = 2 * 2 * d_lanes * itemsize               # dbl-buffered input + output row
    rows_fit = max((vmem_budget - 2 * param_vmem - (4 << 20)) // per_row, 8)
    rows_fit = max((rows_fit // 8) * 8, 8)
    if batch_tile is None:
        batch_tile = min(4096, rows_fit)               # mem-bound: big tiles amortize
    else:
        batch_tile = max(8, min(batch_tile, rows_fit)) # shrink instead of overflowing VMEM

    # ---- grid-step count: >=2 (and even) so v7x's two TCs both get work ----
    steps = pl.cdiv(n, batch_tile)
    if n >= 16:
        steps = max(steps, 2)
        if steps % 2:
            steps += 1
    bt = max(8, pl.cdiv(pl.cdiv(n, steps), 8) * 8)     # minimize last-tile padding
    n_pad = steps * bt

    x_io = x.astype(io_dtype)
    if n_pad != n:
        x_io = jnp.pad(x_io, ((0, n_pad - n), (0, 0)))

    io_vmem = 2 * 2 * bt * d_lanes * itemsize
    vmem_limit = int(min(max(io_vmem + 2 * param_vmem + (4 << 20), 16 << 20),
                         max(vmem_cap - (8 << 20), 16 << 20)))

    flops = int(2 * n_pad * (d * 64 + 64 * 32 + 32 * 32 + 32 * 64 + 64 * d))
    bytes_accessed = int(2 * n_pad * d * itemsize + param_vmem)

    param_specs = [pl.BlockSpec(p.shape, lambda i: (0, 0)) for p in fused]

    out = pl.pallas_call(
        functools.partial(autoencoder_kernel, mxu_dtype=mxu_dtype),
        out_shape=jax.ShapeDtypeStruct((n_pad, d), io_dtype),
        grid_spec=pltpu.PrefetchScalarGridSpec(
            num_scalar_prefetch=0,
            grid=(steps,),
            in_specs=[pl.BlockSpec((bt, d), lambda i: (i, 0))] + param_specs,
            out_specs=pl.BlockSpec((bt, d), lambda i: (i, 0)),
        ),
        compiler_params=pltpu.CompilerParams(
            dimension_semantics=("parallel",),
            vmem_limit_bytes=vmem_limit),
        cost_estimate=pl.CostEstimate(
            flops=flops, transcendentals=0, bytes_accessed=bytes_accessed),
    )(x_io, *fused)

    return out[:n] if n_pad != n else out


# ---------------------------------------------------------------------------
# Pure-JAX reference (unfused, highest precision) for correctness checks
# ---------------------------------------------------------------------------
def autoencoder_ref(x, params):
    w1, b1, w2, b2, w3, b3, w4, b4, w5, b5, w6, b6 = params
    hi = jax.lax.Precision.HIGHEST
    dot = lambda a, b: jnp.dot(a, b, precision=hi)
    h = jnp.maximum(dot(x, w1) + b1, 0.0)
    h = jnp.maximum(dot(h, w2) + b2, 0.0)
    h = dot(h, w3) + b3
    h = jnp.maximum(dot(h, w4) + b4, 0.0)
    h = jnp.maximum(dot(h, w5) + b5, 0.0)
    return dot(h, w6) + b6


if __name__ == "__main__":
    key = jax.random.PRNGKey(0)
    kx, kp = jax.random.split(key)

    batch, input_dim, encoding_dim = 64, 16, 8
    x = jax.random.normal(kx, (batch, input_dim), jnp.float32)
    params = init_params(kp, input_dim, encoding_dim)

    ref = autoencoder_ref(x, params)

    # Default (production) path: bf16 HBM I/O + bf16 weights, >=2 grid steps.
    out = jax.block_until_ready(autoencoder_forward(x, params))
    assert out.shape == (batch, input_dim)
    assert jnp.allclose(out.astype(jnp.float32), ref, atol=5e-2, rtol=5e-2), \
        "bf16 path mismatch vs reference"

    # Full-f32 path with a forced small tile: exercises the multi-step
    # pipeline, tile shrinking and padding logic, tighter tolerance.
    out_f32 = jax.block_until_ready(
        autoencoder_forward(x, params, batch_tile=16, use_bf16=False))
    assert out_f32.dtype == x.dtype
    assert jnp.allclose(out_f32, ref, atol=1e-2, rtol=1e-2), "f32 path mismatch"

    print("KERNEL_OK")
</pallas_src>

<mosaic_0001>
module attributes {stable_mosaic.version = 11 : i64} {
  func.func @autoencoder_kernel(%arg0: i32, %arg1: memref<32x16xbf16, #tpu.memory_space<vmem>>, %arg2: memref<16x64xbf16, #tpu.memory_space<vmem>>, %arg3: memref<1x64xf32, #tpu.memory_space<vmem>>, %arg4: memref<64x32xbf16, #tpu.memory_space<vmem>>, %arg5: memref<1x32xf32, #tpu.memory_space<vmem>>, %arg6: memref<32x32xbf16, #tpu.memory_space<vmem>>, %arg7: memref<1x32xf32, #tpu.memory_space<vmem>>, %arg8: memref<32x64xbf16, #tpu.memory_space<vmem>>, %arg9: memref<1x64xf32, #tpu.memory_space<vmem>>, %arg10: memref<64x16xbf16, #tpu.memory_space<vmem>>, %arg11: memref<1x16xf32, #tpu.memory_space<vmem>>, %arg12: memref<32x16xbf16, #tpu.memory_space<vmem>>) attributes {dimension_semantics = [#tpu.dimension_semantics<parallel>], iteration_bounds = array<i64: 2>, scalar_prefetch = 0 : i64, scratch_operands = 0 : i64, tpu.core_type = #tpu.core_type<tc>, window_params = [{transform_indices = @transform_0, window_bounds = array<i64: 32, 16>}, {pipeline_mode = #tpu.pipeline_mode<synchronous>, transform_indices = @transform_1, window_bounds = array<i64: 16, 64>}, {pipeline_mode = #tpu.pipeline_mode<synchronous>, transform_indices = @transform_2, window_bounds = array<i64: 1, 64>}, {pipeline_mode = #tpu.pipeline_mode<synchronous>, transform_indices = @transform_3, window_bounds = array<i64: 64, 32>}, {pipeline_mode = #tpu.pipeline_mode<synchronous>, transform_indices = @transform_4, window_bounds = array<i64: 1, 32>}, {pipeline_mode = #tpu.pipeline_mode<synchronous>, transform_indices = @transform_5, window_bounds = array<i64: 32, 32>}, {pipeline_mode = #tpu.pipeline_mode<synchronous>, transform_indices = @transform_6, window_bounds = array<i64: 1, 32>}, {pipeline_mode = #tpu.pipeline_mode<synchronous>, transform_indices = @transform_7, window_bounds = array<i64: 32, 64>}, {pipeline_mode = #tpu.pipeline_mode<synchronous>, transform_indices = @transform_8, window_bounds = array<i64: 1, 64>}, {pipeline_mode = #tpu.pipeline_mode<synchronous>, transform_indices = @transform_9, window_bounds = array<i64: 64, 16>}, {pipeline_mode = #tpu.pipeline_mode<synchronous>, transform_indices = @transform_10, window_bounds = array<i64: 1, 16>}, {transform_indices = @transform_11, window_bounds = array<i64: 32, 16>}]} {
    %c0 = arith.constant 0 : index
    %c0_0 = arith.constant 0 : index
    %0 = vector.load %arg1[%c0, %c0_0] : memref<32x16xbf16, #tpu.memory_space<vmem>>, vector<32x16xbf16>
    %c0_1 = arith.constant 0 : index
    %c0_2 = arith.constant 0 : index
    %1 = vector.load %arg2[%c0_1, %c0_2] : memref<16x64xbf16, #tpu.memory_space<vmem>>, vector<16x64xbf16>
    %cst = arith.constant dense<0.000000e+00> : vector<32x64xf32>
    %2 = tpu.matmul %0, %1, %cst {dimension_numbers = #tpu.dot_dimension_numbers<[1], [0], [0], [1], [0, 0, 1, 1], [], []>} : vector<32x16xbf16>, vector<16x64xbf16>, vector<32x64xf32> -> vector<32x64xf32>
    %c0_3 = arith.constant 0 : index
    %c0_4 = arith.constant 0 : index
    %3 = vector.load %arg3[%c0_3, %c0_4] : memref<1x64xf32, #tpu.memory_space<vmem>>, vector<1x64xf32>
    %4 = vector.broadcast %3 : vector<1x64xf32> to vector<32x64xf32>
    %5 = arith.addf %2, %4 : vector<32x64xf32>
    %cst_5 = arith.constant 0.000000e+00 : f32
    %6 = vector.broadcast %cst_5 : f32 to vector<32x64xf32>
    %7 = arith.maximumf %5, %6 : vector<32x64xf32>
    %8 = arith.truncf %7 : vector<32x64xf32> to vector<32x64xbf16>
    %c0_6 = arith.constant 0 : index
    %c0_7 = arith.constant 0 : index
    %9 = vector.load %arg4[%c0_6, %c0_7] : memref<64x32xbf16, #tpu.memory_space<vmem>>, vector<64x32xbf16>
    %cst_8 = arith.constant dense<0.000000e+00> : vector<32x32xf32>
    %10 = tpu.matmul %8, %9, %cst_8 {dimension_numbers = #tpu.dot_dimension_numbers<[1], [0], [0], [1], [0, 0, 1, 1], [], []>} : vector<32x64xbf16>, vector<64x32xbf16>, vector<32x32xf32> -> vector<32x32xf32>
    %c0_9 = arith.constant 0 : index
    %c0_10 = arith.constant 0 : index
    %11 = vector.load %arg5[%c0_9, %c0_10] : memref<1x32xf32, #tpu.memory_space<vmem>>, vector<1x32xf32>
    %12 = vector.broadcast %11 : vector<1x32xf32> to vector<32x32xf32>
    %13 = arith.addf %10, %12 : vector<32x32xf32>
    %cst_11 = arith.constant 0.000000e+00 : f32
    %14 = vector.broadcast %cst_11 : f32 to vector<32x32xf32>
    %15 = arith.maximumf %13, %14 : vector<32x32xf32>
    %16 = arith.truncf %15 : vector<32x32xf32> to vector<32x32xbf16>
    %c0_12 = arith.constant 0 : index
    %c0_13 = arith.constant 0 : index
    %17 = vector.load %arg6[%c0_12, %c0_13] : memref<32x32xbf16, #tpu.memory_space<vmem>>, vector<32x32xbf16>
    %cst_14 = arith.constant dense<0.000000e+00> : vector<32x32xf32>
    %18 = tpu.matmul %16, %17, %cst_14 {dimension_numbers = #tpu.dot_dimension_numbers<[1], [0], [0], [1], [0, 0, 1, 1], [], []>} : vector<32x32xbf16>, vector<32x32xbf16>, vector<32x32xf32> -> vector<32x32xf32>
    %c0_15 = arith.constant 0 : index
    %c0_16 = arith.constant 0 : index
    %19 = vector.load %arg7[%c0_15, %c0_16] : memref<1x32xf32, #tpu.memory_space<vmem>>, vector<1x32xf32>
    %20 = vector.broadcast %19 : vector<1x32xf32> to vector<32x32xf32>
    %21 = arith.addf %18, %20 : vector<32x32xf32>
    %cst_17 = arith.constant 0.000000e+00 : f32
    %22 = vector.broadcast %cst_17 : f32 to vector<32x32xf32>
    %23 = arith.maximumf %21, %22 : vector<32x32xf32>
    %24 = arith.truncf %23 : vector<32x32xf32> to vector<32x32xbf16>
    %c0_18 = arith.constant 0 : index
    %c0_19 = arith.constant 0 : index
    %25 = vector.load %arg8[%c0_18, %c0_19] : memref<32x64xbf16, #tpu.memory_space<vmem>>, vector<32x64xbf16>
    %cst_20 = arith.constant dense<0.000000e+00> : vector<32x64xf32>
    %26 = tpu.matmul %24, %25, %cst_20 {dimension_numbers = #tpu.dot_dimension_numbers<[1], [0], [0], [1], [0, 0, 1, 1], [], []>} : vector<32x32xbf16>, vector<32x64xbf16>, vector<32x64xf32> -> vector<32x64xf32>
    %c0_21 = arith.constant 0 : index
    %c0_22 = arith.constant 0 : index
    %27 = vector.load %arg9[%c0_21, %c0_22] : memref<1x64xf32, #tpu.memory_space<vmem>>, vector<1x64xf32>
    %28 = vector.broadcast %27 : vector<1x64xf32> to vector<32x64xf32>
    %29 = arith.addf %26, %28 : vector<32x64xf32>
    %cst_23 = arith.constant 0.000000e+00 : f32
    %30 = vector.broadcast %cst_23 : f32 to vector<32x64xf32>
    %31 = arith.maximumf %29, %30 : vector<32x64xf32>
    %32 = arith.truncf %31 : vector<32x64xf32> to vector<32x64xbf16>
    %c0_24 = arith.constant 0 : index
    %c0_25 = arith.constant 0 : index
    %33 = vector.load %arg10[%c0_24, %c0_25] : memref<64x16xbf16, #tpu.memory_space<vmem>>, vector<64x16xbf16>
    %cst_26 = arith.constant dense<0.000000e+00> : vector<32x16xf32>
    %34 = tpu.matmul %32, %33, %cst_26 {dimension_numbers = #tpu.dot_dimension_numbers<[1], [0], [0], [1], [0, 0, 1, 1], [], []>} : vector<32x64xbf16>, vector<64x16xbf16>, vector<32x16xf32> -> vector<32x16xf32>
    %c0_27 = arith.constant 0 : index
    %c0_28 = arith.constant 0 : index
    %35 = vector.load %arg11[%c0_27, %c0_28] : memref<1x16xf32, #tpu.memory_space<vmem>>, vector<1x16xf32>
    %36 = vector.broadcast %35 : vector<1x16xf32> to vector<32x16xf32>
    %37 = arith.addf %34, %36 : vector<32x16xf32>
    %38 = arith.truncf %37 : vector<32x16xf32> to vector<32x16xbf16>
    %c0_29 = arith.constant 0 : index
    %c0_30 = arith.constant 0 : index
    %39 = vector.load %arg12[%c0_29, %c0_30] : memref<32x16xbf16, #tpu.memory_space<vmem>>, vector<32x16xbf16>
    tpu.vector_store %arg12[%c0_29, %c0_30], %38 {strides = array<i32>} : memref<32x16xbf16, #tpu.memory_space<vmem>>, vector<32x16xbf16>,
    return
  }
  func.func @transform_0(%arg0: i32) -> (i32, i32) {
    %c0_i32 = arith.constant 0 : i32
    %c0_i32_0 = arith.constant 0 : i32
    return %arg0, %c0_i32 : i32, i32
  }
  func.func @transform_1(%arg0: i32) -> (i32, i32) {
    %c0_i32 = arith.constant 0 : i32
    %c0_i32_0 = arith.constant 0 : i32
    %c0_i32_1 = arith.constant 0 : i32
    return %c0_i32, %c0_i32_0 : i32, i32
  }
  func.func @transform_2(%arg0: i32) -> (i32, i32) {
    %c0_i32 = arith.constant 0 : i32
    %c0_i32_0 = arith.constant 0 : i32
    %c0_i32_1 = arith.constant 0 : i32
    return %c0_i32, %c0_i32_0 : i32, i32
  }
  func.func @transform_3(%arg0: i32) -> (i32, i32) {
    %c0_i32 = arith.constant 0 : i32
    %c0_i32_0 = arith.constant 0 : i32
    %c0_i32_1 = arith.constant 0 : i32
    return %c0_i32, %c0_i32_0 : i32, i32
  }
  func.func @transform_4(%arg0: i32) -> (i32, i32) {
    %c0_i32 = arith.constant 0 : i32
    %c0_i32_0 = arith.constant 0 : i32
    %c0_i32_1 = arith.constant 0 : i32
    return %c0_i32, %c0_i32_0 : i32, i32
  }
  func.func @transform_5(%arg0: i32) -> (i32, i32) {
    %c0_i32 = arith.constant 0 : i32
    %c0_i32_0 = arith.constant 0 : i32
    %c0_i32_1 = arith.constant 0 : i32
    return %c0_i32, %c0_i32_0 : i32, i32
  }
  func.func @transform_6(%arg0: i32) -> (i32, i32) {
    %c0_i32 = arith.constant 0 : i32
    %c0_i32_0 = arith.constant 0 : i32
    %c0_i32_1 = arith.constant 0 : i32
    return %c0_i32, %c0_i32_0 : i32, i32
  }
  func.func @transform_7(%arg0: i32) -> (i32, i32) {
    %c0_i32 = arith.constant 0 : i32
    %c0_i32_0 = arith.constant 0 : i32
    %c0_i32_1 = arith.constant 0 : i32
    return %c0_i32, %c0_i32_0 : i32, i32
  }
  func.func @transform_8(%arg0: i32) -> (i32, i32) {
    %c0_i32 = arith.constant 0 : i32
    %c0_i32_0 = arith.constant 0 : i32
    %c0_i32_1 = arith.constant 0 : i32
    return %c0_i32, %c0_i32_0 : i32, i32
  }
  func.func @transform_9(%arg0: i32) -> (i32, i32) {
    %c0_i32 = arith.constant 0 : i32
    %c0_i32_0 = arith.constant 0 : i32
    %c0_i32_1 = arith.constant 0 : i32
    return %c0_i32, %c0_i32_0 : i32, i32
  }
  func.func @transform_10(%arg0: i32) -> (i32, i32) {
    %c0_i32 = arith.constant 0 : i32
    %c0_i32_0 = arith.constant 0 : i32
    %c0_i32_1 = arith.constant 0 : i32
    return %c0_i32, %c0_i32_0 : i32, i32
  }
  func.func @transform_11(%arg0: i32) -> (i32, i32) {
    %c0_i32 = arith.constant 0 : i32
    %c0_i32_0 = arith.constant 0 : i32
    return %arg0, %c0_i32 : i32, i32
  }
}

</mosaic_0001>

<llo_original>
// kernel: tpu_custom_call.1
$region0: #{tpu_custom_call.1}
  #allocation0 [shape = 'u32[]', space=smem, size = 0x4, offset = 0x4, fixed_abs, tag = 'smem constant byte address 0x4 - core index']
  #allocation1 [shape = 'u32[72,128]{1,0:T(1,128)}', space=vmem, size = 0x9000, scoped, tag = 'internal scratch']
  %s0 = inlined_call_operand.vmem [shape: bf16[64,16], index: 0, kind: input, shape index: {}]
  %s1 = inlined_call_operand.vmem [shape: bf16[16,64], index: 1, kind: input, shape index: {}]
  %s2 = inlined_call_operand.vmem [shape: f32[1,64], index: 2, kind: input, shape index: {}]
  %s3 = inlined_call_operand.vmem [shape: bf16[64,32], index: 3, kind: input, shape index: {}]
  %s4 = inlined_call_operand.vmem [shape: f32[1,32], index: 4, kind: input, shape index: {}]
  %s5 = inlined_call_operand.vmem [shape: bf16[32,32], index: 5, kind: input, shape index: {}]
  %s6 = inlined_call_operand.vmem [shape: f32[1,32], index: 6, kind: input, shape index: {}]
  %s7 = inlined_call_operand.vmem [shape: bf16[32,64], index: 7, kind: input, shape index: {}]
  %s8 = inlined_call_operand.vmem [shape: f32[1,64], index: 8, kind: input, shape index: {}]
  %s9 = inlined_call_operand.vmem [shape: bf16[64,16], index: 9, kind: input, shape index: {}]
  %s10 = inlined_call_operand.vmem [shape: f32[1,16], index: 10, kind: input, shape index: {}]
  %s11 = inlined_call_operand.vmem [shape: bf16[64,16], index: 11, kind: output, shape index: {}]
  %s12 = sld [smem:[#allocation0]]
  $region77: #{tpu_custom_call.1} parent=0
    _
  %s14 = ssub.s32 1, %s12
  %s15 = scalar_select 0, %s14, %s12
  loop: start=0, step=1, limit=4
  $region2: #{tpu_custom_call.1} parent=0 // loop_pre_header
    _
  $region3: #{tpu_custom_call.1} parent=0 // loop_header
    %s17 = sphi 0, %s21
    %p18 = scmp.ge.s32.totalorder %s17, 4
    %s27 = sphi 0, %s29
    %s30 = sphi 0, %s27
    %s31 = sphi 0, %s30
    %s47 = sphi 0, %s31
    %s51 = sphi 0, %s51
    %s53 = sphi 0, %s51
    %s54 = sphi 0, %s53
    %s68 = sphi 0, %s54
    %s72 = sphi 0, %s72
    %s74 = sphi 0, %s72
    %s75 = sphi 0, %s74
    %s89 = sphi 0, %s75
    %s93 = sphi 0, %s93
    %s95 = sphi 0, %s93
    %s96 = sphi 0, %s95
    %s110 = sphi 0, %s96
    %s114 = sphi 0, %s114
    %s116 = sphi 0, %s114
    %s117 = sphi 0, %s116
    %s131 = sphi 0, %s117
    %s135 = sphi 0, %s135
    %s137 = sphi 0, %s135
    %s138 = sphi 0, %s137
    %s152 = sphi 0, %s138
    %s156 = sphi 0, %s156
    %s158 = sphi 0, %s156
    %s159 = sphi 0, %s158
    %s173 = sphi 0, %s159
    %s177 = sphi 0, %s177
    %s179 = sphi 0, %s177
    %s180 = sphi 0, %s179
    %s194 = sphi 0, %s180
    %s198 = sphi 0, %s198
    %s200 = sphi 0, %s198
    %s201 = sphi 0, %s200
    %s215 = sphi 0, %s201
    %s219 = sphi 0, %s219
    %s221 = sphi 0, %s219
    %s222 = sphi 0, %s221
    %s236 = sphi 0, %s222
    %s240 = sphi 0, %s240
    %s242 = sphi 0, %s240
    %s243 = sphi 0, %s242
    %s257 = sphi 0, %s243
    %s263 = sphi 0, %s265
    %s266 = sphi 0, %s263
    %s267 = sphi 0, %s266
    %s283 = sphi 0, %s267
  $region4: #{tpu_custom_call.1} parent=0 // loop_header_branch
    %20 = sbr.rel (%p18) target = $region8
  $region5: #{tpu_custom_call.1} parent=0 // loop_body
    %s22 = ssub.s32 %s17, 1
    %s23 = ssub.s32 %s17, 2
    %s24 = sadd.s32 %s17, 1
    %s25 = ssub.s32 %s17, %s24
    %p26 = scmp.eq.s32.totalorder %s25, 0
    %s28 = sadd.s32 %s27, 1
    %s29 = scalar_select %p26, %s27, %s28
    %p32 = pneg %p26
    %p33 = scmp.eq.s32.totalorder %s17, 1
    %p34 = por %p32, %p33
    %p35 = scmp.ne.s32.totalorder %s27, %s30
    %p36 = scmp.eq.s32.totalorder %s17, 0
    %p37 = por %p35, %p36
    %p38 = scmp.ne.s32.totalorder %s27, %s30
    %p39 = scmp.eq.s32.totalorder %s22, 1
    %p40 = por %p38, %p39
    %p41 = scmp.ne.s32.totalorder %s30, %s31
    %p42 = scmp.eq.s32.totalorder %s22, 0
    %p43 = por %p41, %p42
    %p44 = scmp.ne.s32.totalorder %s30, %s31
    %p45 = scmp.eq.s32.totalorder %s23, 1
    %p46 = por %p44, %p45
    %p48 = scmp.ne.s32.totalorder %s31, %s47
    %p49 = scmp.eq.s32.totalorder %s23, 0
    %p50 = por %p48, %p49
    %s52 = sadd.s32 %s51, 1
    %p55 = scmp.eq.s32.totalorder %s17, 1
    %p56 = scmp.ne.s32.totalorder %s51, %s53
    %p57 = scmp.eq.s32.totalorder %s17, 0
    %p58 = por %p56, %p57
    %p59 = scmp.ne.s32.totalorder %s51, %s53
    %p60 = scmp.eq.s32.totalorder %s22, 1
    %p61 = por %p59, %p60
    %p62 = scmp.ne.s32.totalorder %s53, %s54
    %p63 = scmp.eq.s32.totalorder %s22, 0
    %p64 = por %p62, %p63
    %p65 = scmp.ne.s32.totalorder %s53, %s54
    %p66 = scmp.eq.s32.totalorder %s23, 1
    %p67 = por %p65, %p66
    %p69 = scmp.ne.s32.totalorder %s54, %s68
    %p70 = scmp.eq.s32.totalorder %s23, 0
    %p71 = por %p69, %p70
    %s73 = sadd.s32 %s72, 1
    %p76 = scmp.eq.s32.totalorder %s17, 1
    %p77 = scmp.ne.s32.totalorder %s72, %s74
    %p78 = scmp.eq.s32.totalorder %s17, 0
    %p79 = por %p77, %p78
    %p80 = scmp.ne.s32.totalorder %s72, %s74
    %p81 = scmp.eq.s32.totalorder %s22, 1
    %p82 = por %p80, %p81
    %p83 = scmp.ne.s32.totalorder %s74, %s75
    %p84 = scmp.eq.s32.totalorder %s22, 0
    %p85 = por %p83, %p84
    %p86 = scmp.ne.s32.totalorder %s74, %s75
    %p87 = scmp.eq.s32.totalorder %s23, 1
    %p88 = por %p86, %p87
    %p90 = scmp.ne.s32.totalorder %s75, %s89
    %p91 = scmp.eq.s32.totalorder %s23, 0
    %p92 = por %p90, %p91
    %s94 = sadd.s32 %s93, 1
    %p97 = scmp.eq.s32.totalorder %s17, 1
    %p98 = scmp.ne.s32.totalorder %s93, %s95
    %p99 = scmp.eq.s32.totalorder %s17, 0
    %p100 = por %p98, %p99
    %p101 = scmp.ne.s32.totalorder %s93, %s95
    %p102 = scmp.eq.s32.totalorder %s22, 1
    %p103 = por %p101, %p102
    %p104 = scmp.ne.s32.totalorder %s95, %s96
    %p105 = scmp.eq.s32.totalorder %s22, 0
    %p106 = por %p104, %p105
    %p107 = scmp.ne.s32.totalorder %s95, %s96
    %p108 = scmp.eq.s32.totalorder %s23, 1
    %p109 = por %p107, %p108
    %p111 = scmp.ne.s32.totalorder %s96, %s110
    %p112 = scmp.eq.s32.totalorder %s23, 0
    %p113 = por %p111, %p112
    %s115 = sadd.s32 %s114, 1
    %p118 = scmp.eq.s32.totalorder %s17, 1
    %p119 = scmp.ne.s32.totalorder %s114, %s116
    %p120 = scmp.eq.s32.totalorder %s17, 0
    %p121 = por %p119, %p120
    %p122 = scmp.ne.s32.totalorder %s114, %s116
    %p123 = scmp.eq.s32.totalorder %s22, 1
    %p124 = por %p122, %p123
    %p125 = scmp.ne.s32.totalorder %s116, %s117
    %p126 = scmp.eq.s32.totalorder %s22, 0
    %p127 = por %p125, %p126
    %p128 = scmp.ne.s32.totalorder %s116, %s117
    %p129 = scmp.eq.s32.totalorder %s23, 1
    %p130 = por %p128, %p129
    %p132 = scmp.ne.s32.totalorder %s117, %s131
    %p133 = scmp.eq.s32.totalorder %s23, 0
    %p134 = por %p132, %p133
    %s136 = sadd.s32 %s135, 1
    %p139 = scmp.eq.s32.totalorder %s17, 1
    %p140 = scmp.ne.s32.totalorder %s135, %s137
    %p141 = scmp.eq.s32.totalorder %s17, 0
    %p142 = por %p140, %p141
    %p143 = scmp.ne.s32.totalorder %s135, %s137
    %p144 = scmp.eq.s32.totalorder %s22, 1
    %p145 = por %p143, %p144
    %p146 = scmp.ne.s32.totalorder %s137, %s138
    %p147 = scmp.eq.s32.totalorder %s22, 0
    %p148 = por %p146, %p147
    %p149 = scmp.ne.s32.totalorder %s137, %s138
    %p150 = scmp.eq.s32.totalorder %s23, 1
    %p151 = por %p149, %p150
    %p153 = scmp.ne.s32.totalorder %s138, %s152
    %p154 = scmp.eq.s32.totalorder %s23, 0
    %p155 = por %p153, %p154
    %s157 = sadd.s32 %s156, 1
    %p160 = scmp.eq.s32.totalorder %s17, 1
    %p161 = scmp.ne.s32.totalorder %s156, %s158
    %p162 = scmp.eq.s32.totalorder %s17, 0
    %p163 = por %p161, %p162
    %p164 = scmp.ne.s32.totalorder %s156, %s158
    %p165 = scmp.eq.s32.totalorder %s22, 1
    %p166 = por %p164, %p165
    %p167 = scmp.ne.s32.totalorder %s158, %s159
    %p168 = scmp.eq.s32.totalorder %s22, 0
    %p169 = por %p167, %p168
    %p170 = scmp.ne.s32.totalorder %s158, %s159
    %p171 = scmp.eq.s32.totalorder %s23, 1
    %p172 = por %p170, %p171
    %p174 = scmp.ne.s32.totalorder %s159, %s173
    %p175 = scmp.eq.s32.totalorder %s23, 0
    %p176 = por %p174, %p175
    %s178 = sadd.s32 %s177, 1
    %p181 = scmp.eq.s32.totalorder %s17, 1
    %p182 = scmp.ne.s32.totalorder %s177, %s179
    %p183 = scmp.eq.s32.totalorder %s17, 0
    %p184 = por %p182, %p183
    %p185 = scmp.ne.s32.totalorder %s177, %s179
    %p186 = scmp.eq.s32.totalorder %s22, 1
    %p187 = por %p185, %p186
    %p188 = scmp.ne.s32.totalorder %s179, %s180
    %p189 = scmp.eq.s32.totalorder %s22, 0
    %p190 = por %p188, %p189
    %p191 = scmp.ne.s32.totalorder %s179, %s180
    %p192 = scmp.eq.s32.totalorder %s23, 1
    %p193 = por %p191, %p192
    %p195 = scmp.ne.s32.totalorder %s180, %s194
    %p196 = scmp.eq.s32.totalorder %s23, 0
    %p197 = por %p195, %p196
    %s199 = sadd.s32 %s198, 1
    %p202 = scmp.eq.s32.totalorder %s17, 1
    %p203 = scmp.ne.s32.totalorder %s198, %s200
    %p204 = scmp.eq.s32.totalorder %s17, 0
    %p205 = por %p203, %p204
    %p206 = scmp.ne.s32.totalorder %s198, %s200
    %p207 = scmp.eq.s32.totalorder %s22, 1
    %p208 = por %p206, %p207
    %p209 = scmp.ne.s32.totalorder %s200, %s201
    %p210 = scmp.eq.s32.totalorder %s22, 0
    %p211 = por %p209, %p210
    %p212 = scmp.ne.s32.totalorder %s200, %s201
    %p213 = scmp.eq.s32.totalorder %s23, 1
    %p214 = por %p212, %p213
    %p216 = scmp.ne.s32.totalorder %s201, %s215
    %p217 = scmp.eq.s32.totalorder %s23, 0
    %p218 = por %p216, %p217
    %s220 = sadd.s32 %s219, 1
    %p223 = scmp.eq.s32.totalorder %s17, 1
    %p224 = scmp.ne.s32.totalorder %s219, %s221
    %p225 = scmp.eq.s32.totalorder %s17, 0
    %p226 = por %p224, %p225
    %p227 = scmp.ne.s32.totalorder %s219, %s221
    %p228 = scmp.eq.s32.totalorder %s22, 1
    %p229 = por %p227, %p228
    %p230 = scmp.ne.s32.totalorder %s221, %s222
    %p231 = scmp.eq.s32.totalorder %s22, 0
    %p232 = por %p230, %p231
    %p233 = scmp.ne.s32.totalorder %s221, %s222
    %p234 = scmp.eq.s32.totalorder %s23, 1
    %p235 = por %p233, %p234
    %p237 = scmp.ne.s32.totalorder %s222, %s236
    %p238 = scmp.eq.s32.totalorder %s23, 0
    %p239 = por %p237, %p238
    %s241 = sadd.s32 %s240, 1
    %p244 = scmp.eq.s32.totalorder %s17, 1
    %p245 = scmp.ne.s32.totalorder %s240, %s242
    %p246 = scmp.eq.s32.totalorder %s17, 0
    %p247 = por %p245, %p246
    %p248 = scmp.ne.s32.totalorder %s240, %s242
    %p249 = scmp.eq.s32.totalorder %s22, 1
    %p250 = por %p248, %p249
    %p251 = scmp.ne.s32.totalorder %s242, %s243
    %p252 = scmp.eq.s32.totalorder %s22, 0
    %p253 = por %p251, %p252
    %p254 = scmp.ne.s32.totalorder %s242, %s243
    %p255 = scmp.eq.s32.totalorder %s23, 1
    %p256 = por %p254, %p255
    %p258 = scmp.ne.s32.totalorder %s243, %s257
    %p259 = scmp.eq.s32.totalorder %s23, 0
    %p260 = por %p258, %p259
    %s261 = ssub.s32 %s17, %s24
    %p262 = scmp.eq.s32.totalorder %s261, 0
    %s264 = sadd.s32 %s263, 1
    %s265 = scalar_select %p262, %s263, %s264
    %p268 = pneg %p262
    %p269 = scmp.eq.s32.totalorder %s17, 1
    %p270 = por %p268, %p269
    %p271 = scmp.ne.s32.totalorder %s263, %s266
    %p272 = scmp.eq.s32.totalorder %s17, 0
    %p273 = por %p271, %p272
    %p274 = scmp.ne.s32.totalorder %s263, %s266
    %p275 = scmp.eq.s32.totalorder %s22, 1
    %p276 = por %p274, %p275
    %p277 = scmp.ne.s32.totalorder %s266, %s267
    %p278 = scmp.eq.s32.totalorder %s22, 0
    %p279 = por %p277, %p278
    %p280 = scmp.ne.s32.totalorder %s266, %s267
    %p281 = scmp.eq.s32.totalorder %s23, 1
    %p282 = por %p280, %p281
    %p284 = scmp.ne.s32.totalorder %s267, %s283
    %p285 = scmp.eq.s32.totalorder %s23, 0
    %p286 = por %p284, %p285
    %p287 = scmp.le.s32.totalorder 1, %s17
    %p288 = scmp.lt.s32.totalorder %s17, 3
    %p289 = pnand %p287, %p288
    %p290 = pneg %p289
    // Predicated region
    $region9: #{tpu_custom_call.1} parent=5 // pred_check
      _
    $region10: #{tpu_custom_call.1} parent=5 // pred_check_branch
      %292 = sbr.rel (%p289) target = $region12
    $region11: #{tpu_custom_call.1} parent=5 // pred_region
      %s293 = ssub.s32 %s17, 1
      // Predicated region
      $region13: #{tpu_custom_call.1} parent=11 // pred_check
        %p294 = pneg %p64
      $region14: #{tpu_custom_call.1} parent=11 // pred_check_branch
        %296 = sbr.rel (%p294) target = $region16
      $region15: #{tpu_custom_call.1} parent=11 // pred_region
        _
      $region16: #{tpu_custom_call.1} parent=11 // pred_fallthru
        _
      // Predicated region
      $region17: #{tpu_custom_call.1} parent=11 // pred_check
        %p297 = pneg %p85
      $region18: #{tpu_custom_call.1} parent=11 // pred_check_branch
        %299 = sbr.rel (%p297) target = $region20
      $region19: #{tpu_custom_call.1} parent=11 // pred_region
        _
      $region20: #{tpu_custom_call.1} parent=11 // pred_fallthru
        _
      // Predicated region
      $region21: #{tpu_custom_call.1} parent=11 // pred_check
        %p300 = pneg %p106
      $region22: #{tpu_custom_call.1} parent=11 // pred_check_branch
        %302 = sbr.rel (%p300) target = $region24
      $region23: #{tpu_custom_call.1} parent=11 // pred_region
        _
      $region24: #{tpu_custom_call.1} parent=11 // pred_fallthru
        _
      // Predicated region
      $region25: #{tpu_custom_call.1} parent=11 // pred_check
        %p303 = pneg %p127
      $region26: #{tpu_custom_call.1} parent=11 // pred_check_branch
        %305 = sbr.rel (%p303) target = $region28
      $region27: #{tpu_custom_call.1} parent=11 // pred_region
        _
      $region28: #{tpu_custom_call.1} parent=11 // pred_fallthru
        _
      // Predicated region
      $region29: #{tpu_custom_call.1} parent=11 // pred_check
        %p306 = pneg %p148
      $region30: #{tpu_custom_call.1} parent=11 // pred_check_branch
        %308 = sbr.rel (%p306) target = $region32
      $region31: #{tpu_custom_call.1} parent=11 // pred_region
        _
      $region32: #{tpu_custom_call.1} parent=11 // pred_fallthru
        _
      // Predicated region
      $region33: #{tpu_custom_call.1} parent=11 // pred_check
        %p309 = pneg %p169
      $region34: #{tpu_custom_call.1} parent=11 // pred_check_branch
        %311 = sbr.rel (%p309) target = $region36
      $region35: #{tpu_custom_call.1} parent=11 // pred_region
        _
      $region36: #{tpu_custom_call.1} parent=11 // pred_fallthru
        _
      // Predicated region
      $region37: #{tpu_custom_call.1} parent=11 // pred_check
        %p312 = pneg %p190
      $region38: #{tpu_custom_call.1} parent=11 // pred_check_branch
        %314 = sbr.rel (%p312) target = $region40
      $region39: #{tpu_custom_call.1} parent=11 // pred_region
        _
      $region40: #{tpu_custom_call.1} parent=11 // pred_fallthru
        _
      // Predicated region
      $region41: #{tpu_custom_call.1} parent=11 // pred_check
        %p315 = pneg %p211
      $region42: #{tpu_custom_call.1} parent=11 // pred_check_branch
        %317 = sbr.rel (%p315) target = $region44
      $region43: #{tpu_custom_call.1} parent=11 // pred_region
        _
      $region44: #{tpu_custom_call.1} parent=11 // pred_fallthru
        _
      // Predicated region
      $region45: #{tpu_custom_call.1} parent=11 // pred_check
        %p318 = pneg %p232
      $region46: #{tpu_custom_call.1} parent=11 // pred_check_branch
        %320 = sbr.rel (%p318) target = $region48
      $region47: #{tpu_custom_call.1} parent=11 // pred_region
        _
      $region48: #{tpu_custom_call.1} parent=11 // pred_fallthru
        _
      // Predicated region
      $region49: #{tpu_custom_call.1} parent=11 // pred_check
        %p321 = pneg %p253
      $region50: #{tpu_custom_call.1} parent=11 // pred_check_branch
        %323 = sbr.rel (%p321) target = $region52
      $region51: #{tpu_custom_call.1} parent=11 // pred_region
        _
      $region52: #{tpu_custom_call.1} parent=11 // pred_fallthru
        _
    $region12: #{tpu_custom_call.1} parent=5 // pred_fallthru
      _
    %p324 = scmp.lt.s32.totalorder %s17, 2
    // Predicated region
    $region53: #{tpu_custom_call.1} parent=5 // pred_check
      %p325 = pneg %p324
    $region54: #{tpu_custom_call.1} parent=5 // pred_check_branch
      %327 = sbr.rel (%p325) target = $region56
    $region55: #{tpu_custom_call.1} parent=5 // pred_region
      // Predicated region
      $region57: #{tpu_custom_call.1} parent=55 // pred_check
        %p328 = pneg %p37
      $region58: #{tpu_custom_call.1} parent=55 // pred_check_branch
        %330 = sbr.rel (%p328) target = $region60
      $region59: #{tpu_custom_call.1} parent=55 // pred_region
        %s331 = smul.u32 4, %s17
        %p332 = scmp.lt.s32.totalorder %s331, 7
        %s333 = scalar_select %p332, %s331, 7
        %s334 = smul.addr %s333, 4
        %s335 = scalar_lea.vmem %s0, %s334
        %s336 = smul.u32 4, %s17
      $region60: #{tpu_custom_call.1} parent=55 // pred_fallthru
        _
    $region56: #{tpu_custom_call.1} parent=5 // pred_fallthru
      _
    %p337 = scmp.le.s32.totalorder 1, %s17
    %p338 = scmp.lt.s32.totalorder %s17, 3
    %p339 = pnand %p337, %p338
    %p340 = pneg %p339
    // Predicated region
    $region61: #{tpu_custom_call.1} parent=5 // pred_check
      _
    $region62: #{tpu_custom_call.1} parent=5 // pred_check_branch
      %342 = sbr.rel (%p339) target = $region64
    $region63: #{tpu_custom_call.1} parent=5 // pred_region
      %s343 = ssub.s32 %s17, 1
      %s344 = smul.u32 4, %s22
      %p345 = scmp.lt.s32.totalorder %s344, 7
      %s346 = scalar_select %p345, %s344, 7
      %s347 = smul.addr %s346, 4
      %s348 = scalar_lea.vmem %s0, %s347
      %p349 = pneg %p43
      %p350 = pneg %p40
      %p351 = pneg %p64
      %p352 = pneg %p61
      %p353 = pneg %p85
      %p354 = pneg %p82
      %p355 = pneg %p106
      %p356 = pneg %p103
      %p357 = pneg %p127
      %p358 = pneg %p124
      %p359 = pneg %p148
      %p360 = pneg %p145
      %p361 = pneg %p169
      %p362 = pneg %p166
      %p363 = pneg %p190
      %p364 = pneg %p187
      %p365 = pneg %p211
      %p366 = pneg %p208
      %p367 = pneg %p232
      %p368 = pneg %p229
      %p369 = pneg %p253
      %p370 = pneg %p250
      %p371 = pneg %p279
      %p372 = pneg %p276
      %s373 = smul.u32 4, %s22
      %p374 = scmp.lt.s32.totalorder %s373, 7
      %s375 = scalar_select %p374, %s373, 7
      %s376 = smul.addr %s375, 4
      %s377 = scalar_lea.vmem %s11, %s376
      %s378 = smul.u32 4, %s22
      %p379 = scmp.lt.s32.totalorder %s378, 7
      %s380 = scalar_select %p379, %s378, 7
      %s381 = smul.addr %s380, 4
      %s382 = scalar_lea.vmem %s0, %s381
      %s383 = smul.u32 4, %s22
      %s384 = smul.u32 4, %s22
      %p385 = scmp.lt.s32.totalorder %s384, 7
      %s386 = scalar_select %p385, %s384, 7
      %s387 = smul.addr %s386, 4
      %s388 = scalar_lea.vmem %s11, %s387
      %s389 = smul.u32 4, %s22
      %v391 = vld [vmem:[%s382] sm:$0xf]
      %v392 = vld [vmem:[%s382 + $0x4] sm:$0xf]
      %v393 = vld [vmem:[%s382 + $0x8] sm:$0xf]
      %v394 = vld [vmem:[%s382 + $0xc] sm:$0xf]
      %v395 = vld [vmem:[%s1] sm:$0xf]
      %v396 = vld [vmem:[%s1 + $0x4] sm:$0xf]
      %v397 = vld [vmem:[%s2] sm:$0x1]
      %v399 = vperm.slane %v397, 0
      %v405 = vunpack.c.l.b16 %v391
      %v406 = vunpack.c.l.b16 %v392
      %v407 = vunpack.c.l.b16 %v393
      %v408 = vunpack.c.l.b16 %v394
      %v409 = vpack.c.b16 %v406, %v405
      %v410 = vpack.c.b16 %v408, %v407
      %v413 = vunpack.c.l.b16 %v395
      %v414 = vunpack.c.l.b16 %v396
      %v415 = vpack.c.b16 %v414, %v413
      %vm417 = vcmask 130048
      %v419 = vsel %vm417, %v409, 0
      %v422 = vsel %vm417, %v410, 0
      %424 = vmatpush.bf16.msra.mxu0 0
      %425 = vmatpush.bf16.msra.mxu0 0
      %426 = vmatpush.bf16.msra.mxu0 0
      %427 = vmatpush.bf16.msra.mxu0 0
      %428 = vmatpush.bf16.msra.mxu0 0
      %429 = vmatpush.bf16.msra.mxu0 0
      %430 = vmatpush.bf16.msra.mxu0 0
      %431 = vmatpush.bf16.msra.mxu0 %v415
      %432 = vmatmul.bf16.gmra.mxu0 %v419
      %v433 = vpop.f32.mrf.mxu0
      %v434 = vadd.f32 %v399, %v433
      %v435 = vpop.f32.mrf.mxu0
      %v436 = vadd.f32 %v399, %v435
      %437 = vmatmul.bf16.gmra.mxu0 %v422
      %v438 = vpop.f32.mrf.mxu0
      %v439 = vadd.f32 %v399, %v438
      %v440 = vpop.f32.mrf.mxu0
      %v441 = vadd.f32 %v399, %v440
      %442 = vdwg.mxu0
      %v443 = vmax.f32 %v434, 0.0
      %v444 = vmax.f32 %v436, 0.0
      %v445 = vmax.f32 %v439, 0.0
      %v446 = vmax.f32 %v441, 0.0
      %v447 = vpack.c.bf16 %v444, %v443
      %v448 = vpack.c.bf16 %v446, %v445
      %v449 = vld [vmem:[%s3] sm:$0xf]
      %v450 = vld [vmem:[%s3 + $0x4] sm:$0xf]
      %v451 = vld [vmem:[%s3 + $0x8] sm:$0xf]
      %v452 = vld [vmem:[%s3 + $0xc] sm:$0xf]
      %v453 = vld [vmem:[%s3 + $0x10] sm:$0xf]
      %v454 = vld [vmem:[%s3 + $0x14] sm:$0xf]
      %v455 = vld [vmem:[%s3 + $0x18] sm:$0xf]
      %v456 = vld [vmem:[%s3 + $0x1c] sm:$0xf]
      %v457 = vld [vmem:[%s4] sm:$0x1]
      %v459 = vperm.slane %v457, 0
      %v469 = vunpack.c.l.b16 %v449
      %v470 = vunpack.c.l.b16 %v450
      %v471 = vunpack.c.l.b16 %v451
      %v472 = vunpack.c.l.b16 %v452
      %v473 = vunpack.c.l.b16 %v453
      %v474 = vunpack.c.l.b16 %v454
      %v475 = vunpack.c.l.b16 %v455
      %v476 = vunpack.c.l.b16 %v456
      %v477 = vpack.c.b16 %v470, %v469
      %v478 = vpack.c.b16 %v472, %v471
      %v479 = vpack.c.b16 %v474, %v473
      %v480 = vpack.c.b16 %v476, %v475
      %vm485 = vcmask 523264
      %v487 = vsel %vm485, %v447, 0
      %v490 = vsel %vm485, %v448, 0
      %492 = vmatpush.bf16.msra.mxu0 0
      %493 = vmatpush.bf16.msra.mxu0 0
      %494 = vmatpush.bf16.msra.mxu0 0
      %495 = vmatpush.bf16.msra.mxu0 0
      %496 = vmatpush.bf16.msra.mxu0 %v480
      %497 = vmatpush.bf16.msra.mxu0 %v479
      %498 = vmatpush.bf16.msra.mxu0 %v478
      %499 = vmatpush.bf16.msra.mxu0 %v477
      %500 = vmatmul.bf16.gmra.mxu0 %v487
      %v501 = vpop.f32.mrf.mxu0
      %v502 = vadd.f32 %v459, %v501
      %v503 = vpop.f32.mrf.mxu0
      %v504 = vadd.f32 %v459, %v503
      %505 = vmatmul.bf16.gmra.mxu0 %v490
      %v506 = vpop.f32.mrf.mxu0
      %v507 = vadd.f32 %v459, %v506
      %v508 = vpop.f32.mrf.mxu0
      %v509 = vadd.f32 %v459, %v508
      %510 = vdwg.mxu0
      %v511 = vmax.f32 %v502, 0.0
      %v512 = vmax.f32 %v504, 0.0
      %v513 = vmax.f32 %v507, 0.0
      %v514 = vmax.f32 %v509, 0.0
      %v515 = vpack.c.bf16 %v512, %v511
      %v516 = vpack.c.bf16 %v514, %v513
      %v517 = vld [vmem:[%s5] sm:$0xf]
      %v518 = vld [vmem:[%s5 + $0x4] sm:$0xf]
      %v519 = vld [vmem:[%s5 + $0x8] sm:$0xf]
      %v520 = vld [vmem:[%s5 + $0xc] sm:$0xf]
      %v521 = vld [vmem:[%s6] sm:$0x1]
      %v523 = vperm.slane %v521, 0
      %v529 = vunpack.c.l.b16 %v517
      %v530 = vunpack.c.l.b16 %v518
      %v531 = vunpack.c.l.b16 %v519
      %v532 = vunpack.c.l.b16 %v520
      %v533 = vpack.c.b16 %v530, %v529
      %v534 = vpack.c.b16 %v532, %v531
      %vm537 = vcmask 261120
      %v539 = vsel %vm537, %v515, 0
      %v542 = vsel %vm537, %v516, 0
      %544 = vmatpush.bf16.msra.mxu0 0
      %545 = vmatpush.bf16.msra.mxu0 0
      %546 = vmatpush.bf16.msra.mxu0 0
      %547 = vmatpush.bf16.msra.mxu0 0
      %548 = vmatpush.bf16.msra.mxu0 0
      %549 = vmatpush.bf16.msra.mxu0 0
      %550 = vmatpush.bf16.msra.mxu0 %v534
      %551 = vmatpush.bf16.msra.mxu0 %v533
      %552 = vmatmul.bf16.gmra.mxu0 %v539
      %v553 = vpop.f32.mrf.mxu0
      %v554 = vadd.f32 %v523, %v553
      %v555 = vpop.f32.mrf.mxu0
      %v556 = vadd.f32 %v523, %v555
      %557 = vmatmul.bf16.gmra.mxu0 %v542
      %v558 = vpop.f32.mrf.mxu0
      %v559 = vadd.f32 %v523, %v558
      %v560 = vpop.f32.mrf.mxu0
      %v561 = vadd.f32 %v523, %v560
      %562 = vdwg.mxu0
      %v563 = vmax.f32 %v554, 0.0
      %v564 = vmax.f32 %v556, 0.0
      %v565 = vmax.f32 %v559, 0.0
      %v566 = vmax.f32 %v561, 0.0
      %v567 = vpack.c.bf16 %v564, %v563
      %v568 = vpack.c.bf16 %v566, %v565
      %v569 = vld [vmem:[%s7] sm:$0xf]
      %v570 = vld [vmem:[%s7 + $0x4] sm:$0xf]
      %v571 = vld [vmem:[%s7 + $0x8] sm:$0xf]
      %v572 = vld [vmem:[%s7 + $0xc] sm:$0xf]
      %v573 = vld [vmem:[%s8] sm:$0x1]
      %v575 = vperm.slane %v573, 0
      %v581 = vunpack.c.l.b16 %v569
      %v582 = vunpack.c.l.b16 %v570
      %v583 = vunpack.c.l.b16 %v571
      %v584 = vunpack.c.l.b16 %v572
      %v585 = vpack.c.b16 %v582, %v581
      %v586 = vpack.c.b16 %v584, %v583
      %v590 = vsel %vm537, %v567, 0
      %v593 = vsel %vm537, %v568, 0
      %595 = vmatpush.bf16.msra.mxu0 0
      %596 = vmatpush.bf16.msra.mxu0 0
      %597 = vmatpush.bf16.msra.mxu0 0
      %598 = vmatpush.bf16.msra.mxu0 0
      %599 = vmatpush.bf16.msra.mxu0 0
      %600 = vmatpush.bf16.msra.mxu0 0
      %601 = vmatpush.bf16.msra.mxu0 %v586
      %602 = vmatpush.bf16.msra.mxu0 %v585
      %603 = vmatmul.bf16.gmra.mxu0 %v590
      %v604 = vpop.f32.mrf.mxu0
      %v605 = vadd.f32 %v575, %v604
      %v606 = vpop.f32.mrf.mxu0
      %v607 = vadd.f32 %v575, %v606
      %608 = vmatmul.bf16.gmra.mxu0 %v593
      %v609 = vpop.f32.mrf.mxu0
      %v610 = vadd.f32 %v575, %v609
      %v611 = vpop.f32.mrf.mxu0
      %v612 = vadd.f32 %v575, %v611
      %613 = vdwg.mxu0
      %v614 = vmax.f32 %v605, 0.0
      %v615 = vmax.f32 %v607, 0.0
      %v616 = vmax.f32 %v610, 0.0
      %v617 = vmax.f32 %v612, 0.0
      %v618 = vpack.c.bf16 %v615, %v614
      %v619 = vpack.c.bf16 %v617, %v616
      %v620 = vld [vmem:[%s9] sm:$0xf]
      %v621 = vld [vmem:[%s9 + $0x4] sm:$0xf]
      %v622 = vld [vmem:[%s9 + $0x8] sm:$0xf]
      %v623 = vld [vmem:[%s9 + $0xc] sm:$0xf]
      %v624 = vld [vmem:[%s9 + $0x10] sm:$0xf]
      %v625 = vld [vmem:[%s9 + $0x14] sm:$0xf]
      %v626 = vld [vmem:[%s9 + $0x18] sm:$0xf]
      %v627 = vld [vmem:[%s9 + $0x1c] sm:$0xf]
      %v628 = vld [vmem:[%s10] sm:$0x1]
      %v630 = vperm.slane %v628, 0
      %v640 = vunpack.c.l.b16 %v620
      %v641 = vunpack.c.l.b16 %v621
      %v642 = vunpack.c.l.b16 %v622
      %v643 = vunpack.c.l.b16 %v623
      %v644 = vunpack.c.l.b16 %v624
      %v645 = vunpack.c.l.b16 %v625
      %v646 = vunpack.c.l.b16 %v626
      %v647 = vunpack.c.l.b16 %v627
      %v648 = vpack.c.b16 %v641, %v640
      %v649 = vpack.c.b16 %v643, %v642
      %v650 = vpack.c.b16 %v645, %v644
      %v651 = vpack.c.b16 %v647, %v646
      %v657 = vsel %vm485, %v618, 0
      %v660 = vsel %vm485, %v619, 0
      %662 = vmatpush.bf16.msra.mxu0 0
      %663 = vmatpush.bf16.msra.mxu0 0
      %664 = vmatpush.bf16.msra.mxu0 0
      %665 = vmatpush.bf16.msra.mxu0 0
      %666 = vmatpush.bf16.msra.mxu0 %v651
      %667 = vmatpush.bf16.msra.mxu0 %v650
      %668 = vmatpush.bf16.msra.mxu0 %v649
      %669 = vmatpush.bf16.msra.mxu0 %v648
      %670 = vmatmul.bf16.gmra.mxu0 %v657
      %v671 = vpop.f32.mrf.mxu0
      %v672 = vadd.f32 %v630, %v671
      %v673 = vpop.f32.mrf.mxu0
      %v674 = vadd.f32 %v630, %v673
      %675 = vmatmul.bf16.gmra.mxu0 %v660
      %v676 = vpop.f32.mrf.mxu0
      %v677 = vadd.f32 %v630, %v676
      %v678 = vpop.f32.mrf.mxu0
      %v679 = vadd.f32 %v630, %v678
      %680 = vdwg.mxu0
      %v681 = vpack.c.bf16 %v672, %v672
      %v682 = vpack.c.bf16 %v674, %v674
      %v683 = vpack.c.bf16 %v677, %v677
      %v684 = vpack.c.bf16 %v679, %v679
      %vm685 = vcmask 125952
      %686 = vst.msk [vmem:[%s388] sm:$0xf] %vm685, %v681
      %687 = vst.msk [vmem:[%s388 + $0x4] sm:$0xf] %vm685, %v682
      %688 = vst.msk [vmem:[%s388 + $0x8] sm:$0xf] %vm685, %v683
      %689 = vst.msk [vmem:[%s388 + $0xc] sm:$0xf] %vm685, %v684
      %s690 = smul.u32 4, %s22
      %p691 = scmp.lt.s32.totalorder %s690, 7
      %s692 = scalar_select %p691, %s690, 7
      %s693 = smul.addr %s692, 4
      %s694 = scalar_lea.vmem %s11, %s693
      // Predicated region
      $region65: #{tpu_custom_call.1} parent=63 // pred_check
        %p695 = pneg %p276
      $region66: #{tpu_custom_call.1} parent=63 // pred_check_branch
        %697 = sbr.rel (%p695) target = $region68
      $region67: #{tpu_custom_call.1} parent=63 // pred_region
        %s698 = smul.u32 4, %s22
      $region68: #{tpu_custom_call.1} parent=63 // pred_fallthru
        _
    $region64: #{tpu_custom_call.1} parent=5 // pred_fallthru
      _
    %p699 = scmp.le.s32.totalorder 2, %s17
    // Predicated region
    $region69: #{tpu_custom_call.1} parent=5 // pred_check
      %p700 = pneg %p699
    $region70: #{tpu_custom_call.1} parent=5 // pred_check_branch
      %702 = sbr.rel (%p700) target = $region72
    $region71: #{tpu_custom_call.1} parent=5 // pred_region
      %s703 = ssub.s32 %s17, 2
      // Predicated region
      $region73: #{tpu_custom_call.1} parent=71 // pred_check
        %p704 = pneg %p282
      $region74: #{tpu_custom_call.1} parent=71 // pred_check_branch
        %706 = sbr.rel (%p704) target = $region76
      $region75: #{tpu_custom_call.1} parent=71 // pred_region
        %s707 = smul.u32 4, %s23
        %p708 = scmp.lt.s32.totalorder %s707, 7
        %s709 = scalar_select %p708, %s707, 7
        %s710 = smul.addr %s709, 4
        %s711 = scalar_lea.vmem %s11, %s710
      $region76: #{tpu_custom_call.1} parent=71 // pred_fallthru
        _
    $region72: #{tpu_custom_call.1} parent=5 // pred_fallthru
      _
  $region6: #{tpu_custom_call.1} parent=0 // loop_footer
    %s21 = sadd.s32 1, %s17
  $region7: #{tpu_custom_call.1} parent=0 // loop_footer_branch
    %16 = sbr.rel target = $region3
  $region8: #{tpu_custom_call.1} parent=0 // loop_exit
    _

</llo_original>
